<compile_context>
chip_gen: v5e
topology: v5e:2x2
jax: 0.10.0
libtpu: 0.0.40
codegen_flags: <defaults>
</compile_context>

<pallas_src>
import jax
import jax.numpy as jnp
from jax.experimental import pallas as pl
from jax.experimental.pallas import tpu as pltpu


def physics_encoder_kernel(
    phys_ref,    # [TB, P]
    gear_ref,    # [TB, G]
    w1g_ref,     # [G, L]    gear_encoder Linear1 weight
    w1e_p_ref,   # [P, H]    encoder Linear1 weight rows acting on physics_params
    wgf_ref,     # [L, H]    folded weight  W2g @ W1e[P:]
    w2e_ref,     # [H, Lo]   encoder Linear2 weight
    bias_ref,    # [3, BW]   rows = (b1g, b_fold, b2e), each zero-padded to BW lanes
    out_ref,     # [TB, Lo]
):
    L = w1g_ref.shape[1]
    H = wgf_ref.shape[1]
    Lo = w2e_ref.shape[1]

    # Static slices into the packed bias buffer (zero-cost views).
    b1g = bias_ref[0:1, 0:L]
    b_fold = bias_ref[1:2, 0:H]
    b2e = bias_ref[2:3, 0:Lo]

    # ---- ForwardGearEncoder first layer (Dropout == identity in eval) ----
    h = jnp.maximum(
        jnp.dot(gear_ref[...], w1g_ref[...], preferred_element_type=jnp.float32) + b1g,
        0.0)

    # ---- encoder Linear1 with the gear-encoder Linear2 folded in ----
    e = jnp.maximum(
        jnp.dot(phys_ref[...], w1e_p_ref[...], preferred_element_type=jnp.float32)
        + jnp.dot(h, wgf_ref[...], preferred_element_type=jnp.float32)
        + b_fold,
        0.0)

    # ---- encoder Linear2 (final Dropout == identity) ----
    out_ref[...] = jnp.dot(e, w2e_ref[...], preferred_element_type=jnp.float32) + b2e


def _round_up(x, m):
    return (x + m - 1) // m * m


def prepare_params(params):
    """One-time parameter massaging: eval-mode fold + bias packing.

    Do NOT reuse the folded weights for a training-mode (Dropout active) kernel.
    """
    w1e_g = params["w1e_g"].astype(jnp.float32)
    w_gfold = jnp.dot(params["w2g"].astype(jnp.float32), w1e_g,
                      precision=jax.lax.Precision.HIGHEST)                 # [L, H]
    b_fold = (jnp.dot(params["b2g"].astype(jnp.float32), w1e_g,
                      precision=jax.lax.Precision.HIGHEST)
              + params["b1e"].astype(jnp.float32))                         # [1, H]

    b1g = params["b1g"].reshape(1, -1).astype(jnp.float32)
    b2e = params["b2e"].reshape(1, -1).astype(jnp.float32)
    b_fold = b_fold.reshape(1, -1)

    BW = _round_up(max(b1g.shape[1], b_fold.shape[1], b2e.shape[1]), 128)

    def pad_bias(b):
        return jnp.pad(b, ((0, 0), (0, BW - b.shape[1])))

    biases = jnp.concatenate([pad_bias(b1g), pad_bias(b_fold), pad_bias(b2e)], axis=0)

    return {
        "w1g": params["w1g"].astype(jnp.float32),
        "w1e_p": params["w1e_p"].astype(jnp.float32),
        "w_gfold": w_gfold,
        "w2e": params["w2e"].astype(jnp.float32),
        "biases": biases,
    }


def physics_encoder_forward(physics_params, gear_params, prepared):
    """Forward pass using prepared (folded/packed) parameters."""
    if physics_params.ndim == 1:
        physics_params = physics_params[None, :]
    if gear_params.ndim == 1:
        gear_params = gear_params[None, :]
    physics_params = physics_params.astype(jnp.float32)
    gear_params = gear_params.astype(jnp.float32)

    B, P = physics_params.shape
    G = gear_params.shape[1]
    Lo = prepared["w2e"].shape[1]

    SUBLANE = 8
    CAP = 1024                                 # ~1 MB/step double-buffered, fine on v7x 64 MiB
    TB = min(CAP, _round_up(B, SUBLANE))
    grid = (pl.cdiv(B, TB),)                   # ragged last block handled by Pallas

    def act_spec(feat):
        # Pipelined per-grid-step batch tile.
        return pl.BlockSpec((TB, feat), lambda i: (i, 0))

    def resident_spec(arr):
        # Grid-invariant block: DMA'd once, stays resident in VMEM.
        return pl.BlockSpec(arr.shape, lambda i: (0, 0))

    out = pl.pallas_call(
        physics_encoder_kernel,
        out_shape=jax.ShapeDtypeStruct((B, Lo), jnp.float32),
        grid_spec=pltpu.PrefetchScalarGridSpec(
            num_scalar_prefetch=0,
            grid=grid,
            in_specs=[
                act_spec(P), act_spec(G),
                resident_spec(prepared["w1g"]),
                resident_spec(prepared["w1e_p"]),
                resident_spec(prepared["w_gfold"]),
                resident_spec(prepared["w2e"]),
                resident_spec(prepared["biases"]),
            ],
            out_specs=pl.BlockSpec((TB, Lo), lambda i: (i, 0)),
        ),
        compiler_params=pltpu.CompilerParams(
            dimension_semantics=("parallel",),       # batch tiles independent -> megacore
            vmem_limit_bytes=32 * 1024 * 1024,       # safe on v5e/v6e (128 MiB) and v7x (64 MiB)
        ),
    )(physics_params, gear_params,
      prepared["w1g"], prepared["w1e_p"], prepared["w_gfold"],
      prepared["w2e"], prepared["biases"])

    return out


def init_params(key, input_dim, latent_dim, gear_length, gear_dim):
    """Deterministic synthetic init (PyTorch-Linear-style uniform ranges)."""
    def linear(key, fan_in, fan_out):
        kw, kb = jax.random.split(key)
        bound = 1.0 / jnp.sqrt(fan_in)
        w = jax.random.uniform(kw, (fan_in, fan_out), jnp.float32, -bound, bound)
        b = jax.random.uniform(kb, (1, fan_out), jnp.float32, -bound, bound)
        return w, b

    k1, k2, k3, k4 = jax.random.split(key, 4)
    w1g, b1g = linear(k1, gear_length, latent_dim)       # gear_encoder Linear1
    w2g, b2g = linear(k2, latent_dim, gear_dim)          # gear_encoder Linear2
    w1e, b1e = linear(k3, input_dim + gear_dim, 64)      # encoder Linear1
    w2e, b2e = linear(k4, 64, latent_dim)                # encoder Linear2

    return {
        "w1g": w1g, "b1g": b1g,
        "w2g": w2g, "b2g": b2g,
        "w1e_p": w1e[:input_dim, :],     # rows acting on physics_params
        "w1e_g": w1e[input_dim:, :],     # rows acting on gear_latent
        "b1e": b1e,
        "w2e": w2e, "b2e": b2e,
    }


def reference_forward(physics_params, gear_params, params):
    """Plain-JAX reference of the ORIGINAL (unfolded) eval-mode computation."""
    if physics_params.ndim == 1:
        physics_params = physics_params[None, :]
    if gear_params.ndim == 1:
        gear_params = gear_params[None, :]
    h = jnp.maximum(gear_params @ params["w1g"] + params["b1g"], 0.0)
    gl = h @ params["w2g"] + params["b2g"]
    cat = jnp.concatenate([physics_params, gl], axis=1)
    w1e = jnp.concatenate([params["w1e_p"], params["w1e_g"]], axis=0)
    e = jnp.maximum(cat @ w1e + params["b1e"], 0.0)
    return e @ params["w2e"] + params["b2e"]


if __name__ == "__main__":
    input_dim = 8       # physics_params feature dim
    gear_length = 6     # gear_params feature dim
    latent_dim = 32
    gear_dim = 4

    key = jax.random.PRNGKey(0)
    kp, kd = jax.random.split(key)
    params = init_params(kp, input_dim, latent_dim, gear_length, gear_dim)
    prepared = prepare_params(params)            # folded/packed once, reused per call

    # B=2   : single 8-row ragged tile (inference-style call)
    # B=300 : one 304-row tile (~1% padding waste instead of previous 41%)
    # B=2500: grid=3 (exercises pipelined multi-tile + ragged last block; 2 TCs on v7x)
    for B in (2, 300, 2500):
        kx, kg, kd = jax.random.split(kd, 3)
        physics_params = jax.random.normal(kx, (B, input_dim), jnp.float32)
        gear_params = jax.random.normal(kg, (B, gear_length), jnp.float32)

        out = physics_encoder_forward(physics_params, gear_params, prepared)
        out = jax.block_until_ready(out)

        ref = reference_forward(physics_params, gear_params, params)
        assert out.shape == (B, latent_dim), out.shape
        assert jnp.allclose(out, ref, atol=1e-4, rtol=1e-4), \
            f"Pallas output mismatch vs reference (B={B})"

    print("KERNEL_OK")
</pallas_src>

<mosaic_0001>
module attributes {stable_mosaic.version = 11 : i64} {
  func.func @physics_encoder_kernel(%arg0: i32, %arg1: memref<8x8xf32, #tpu.memory_space<vmem>>, %arg2: memref<8x6xf32, #tpu.memory_space<vmem>>, %arg3: memref<6x32xf32, #tpu.memory_space<vmem>>, %arg4: memref<8x64xf32, #tpu.memory_space<vmem>>, %arg5: memref<32x64xf32, #tpu.memory_space<vmem>>, %arg6: memref<64x32xf32, #tpu.memory_space<vmem>>, %arg7: memref<3x128xf32, #tpu.memory_space<vmem>>, %arg8: memref<8x32xf32, #tpu.memory_space<vmem>>) attributes {dimension_semantics = [#tpu.dimension_semantics<parallel>], iteration_bounds = array<i64: 1>, scalar_prefetch = 0 : i64, scratch_operands = 0 : i64, tpu.core_type = #tpu.core_type<tc>, window_params = [{transform_indices = @transform_0, window_bounds = array<i64: 8, 8>}, {transform_indices = @transform_1, window_bounds = array<i64: 8, 6>}, {pipeline_mode = #tpu.pipeline_mode<synchronous>, transform_indices = @transform_2, window_bounds = array<i64: 6, 32>}, {pipeline_mode = #tpu.pipeline_mode<synchronous>, transform_indices = @transform_3, window_bounds = array<i64: 8, 64>}, {pipeline_mode = #tpu.pipeline_mode<synchronous>, transform_indices = @transform_4, window_bounds = array<i64: 32, 64>}, {pipeline_mode = #tpu.pipeline_mode<synchronous>, transform_indices = @transform_5, window_bounds = array<i64: 64, 32>}, {pipeline_mode = #tpu.pipeline_mode<synchronous>, transform_indices = @transform_6, window_bounds = array<i64: 3, 128>}, {transform_indices = @transform_7, window_bounds = array<i64: 8, 32>}]} {
    %c0 = arith.constant 0 : index
    %c0_0 = arith.constant 0 : index
    %0 = vector.load %arg7[%c0, %c0_0] : memref<3x128xf32, #tpu.memory_space<vmem>>, vector<1x32xf32>
    %c1 = arith.constant 1 : index
    %c0_1 = arith.constant 0 : index
    %1 = vector.load %arg7[%c1, %c0_1] : memref<3x128xf32, #tpu.memory_space<vmem>>, vector<1x64xf32>
    %c2 = arith.constant 2 : index
    %c0_2 = arith.constant 0 : index
    %2 = vector.load %arg7[%c2, %c0_2] : memref<3x128xf32, #tpu.memory_space<vmem>>, vector<1x32xf32>
    %c0_3 = arith.constant 0 : index
    %c0_4 = arith.constant 0 : index
    %3 = vector.load %arg2[%c0_3, %c0_4] : memref<8x6xf32, #tpu.memory_space<vmem>>, vector<8x6xf32>
    %c0_5 = arith.constant 0 : index
    %c0_6 = arith.constant 0 : index
    %4 = vector.load %arg3[%c0_5, %c0_6] : memref<6x32xf32, #tpu.memory_space<vmem>>, vector<6x32xf32>
    %cst = arith.constant dense<0.000000e+00> : vector<8x32xf32>
    %5 = tpu.matmul %3, %4, %cst {dimension_numbers = #tpu.dot_dimension_numbers<[1], [0], [0], [1], [0, 0, 1, 1], [], []>} : vector<8x6xf32>, vector<6x32xf32>, vector<8x32xf32> -> vector<8x32xf32>
    %6 = vector.broadcast %0 : vector<1x32xf32> to vector<8x32xf32>
    %7 = arith.addf %5, %6 : vector<8x32xf32>
    %cst_7 = arith.constant 0.000000e+00 : f32
    %8 = vector.broadcast %cst_7 : f32 to vector<8x32xf32>
    %9 = arith.maximumf %7, %8 : vector<8x32xf32>
    %c0_8 = arith.constant 0 : index
    %c0_9 = arith.constant 0 : index
    %10 = vector.load %arg1[%c0_8, %c0_9] : memref<8x8xf32, #tpu.memory_space<vmem>>, vector<8x8xf32>
    %c0_10 = arith.constant 0 : index
    %c0_11 = arith.constant 0 : index
    %11 = vector.load %arg4[%c0_10, %c0_11] : memref<8x64xf32, #tpu.memory_space<vmem>>, vector<8x64xf32>
    %cst_12 = arith.constant dense<0.000000e+00> : vector<8x64xf32>
    %12 = tpu.matmul %10, %11, %cst_12 {dimension_numbers = #tpu.dot_dimension_numbers<[1], [0], [0], [1], [0, 0, 1, 1], [], []>} : vector<8x8xf32>, vector<8x64xf32>, vector<8x64xf32> -> vector<8x64xf32>
    %c0_13 = arith.constant 0 : index
    %c0_14 = arith.constant 0 : index
    %13 = vector.load %arg5[%c0_13, %c0_14] : memref<32x64xf32, #tpu.memory_space<vmem>>, vector<32x64xf32>
    %cst_15 = arith.constant dense<0.000000e+00> : vector<8x64xf32>
    %14 = tpu.matmul %9, %13, %cst_15 {dimension_numbers = #tpu.dot_dimension_numbers<[1], [0], [0], [1], [0, 0, 1, 1], [], []>} : vector<8x32xf32>, vector<32x64xf32>, vector<8x64xf32> -> vector<8x64xf32>
    %15 = arith.addf %12, %14 : vector<8x64xf32>
    %16 = vector.broadcast %1 : vector<1x64xf32> to vector<8x64xf32>
    %17 = arith.addf %15, %16 : vector<8x64xf32>
    %cst_16 = arith.constant 0.000000e+00 : f32
    %18 = vector.broadcast %cst_16 : f32 to vector<8x64xf32>
    %19 = arith.maximumf %17, %18 : vector<8x64xf32>
    %c0_17 = arith.constant 0 : index
    %c0_18 = arith.constant 0 : index
    %20 = vector.load %arg6[%c0_17, %c0_18] : memref<64x32xf32, #tpu.memory_space<vmem>>, vector<64x32xf32>
    %cst_19 = arith.constant dense<0.000000e+00> : vector<8x32xf32>
    %21 = tpu.matmul %19, %20, %cst_19 {dimension_numbers = #tpu.dot_dimension_numbers<[1], [0], [0], [1], [0, 0, 1, 1], [], []>} : vector<8x64xf32>, vector<64x32xf32>, vector<8x32xf32> -> vector<8x32xf32>
    %22 = vector.broadcast %2 : vector<1x32xf32> to vector<8x32xf32>
    %23 = arith.addf %21, %22 : vector<8x32xf32>
    %c0_20 = arith.constant 0 : index
    %c0_21 = arith.constant 0 : index
    %24 = vector.load %arg8[%c0_20, %c0_21] : memref<8x32xf32, #tpu.memory_space<vmem>>, vector<8x32xf32>
    tpu.vector_store %arg8[%c0_20, %c0_21], %23 {strides = array<i32>} : memref<8x32xf32, #tpu.memory_space<vmem>>, vector<8x32xf32>,
    return
  }
  func.func @transform_0(%arg0: i32) -> (i32, i32) {
    %c0_i32 = arith.constant 0 : i32
    %c0_i32_0 = arith.constant 0 : i32
    return %arg0, %c0_i32 : i32, i32
  }
  func.func @transform_1(%arg0: i32) -> (i32, i32) {
    %c0_i32 = arith.constant 0 : i32
    %c0_i32_0 = arith.constant 0 : i32
    return %arg0, %c0_i32 : i32, i32
  }
  func.func @transform_2(%arg0: i32) -> (i32, i32) {
    %c0_i32 = arith.constant 0 : i32
    %c0_i32_0 = arith.constant 0 : i32
    %c0_i32_1 = arith.constant 0 : i32
    return %c0_i32, %c0_i32_0 : i32, i32
  }
  func.func @transform_3(%arg0: i32) -> (i32, i32) {
    %c0_i32 = arith.constant 0 : i32
    %c0_i32_0 = arith.constant 0 : i32
    %c0_i32_1 = arith.constant 0 : i32
    return %c0_i32, %c0_i32_0 : i32, i32
  }
  func.func @transform_4(%arg0: i32) -> (i32, i32) {
    %c0_i32 = arith.constant 0 : i32
    %c0_i32_0 = arith.constant 0 : i32
    %c0_i32_1 = arith.constant 0 : i32
    return %c0_i32, %c0_i32_0 : i32, i32
  }
  func.func @transform_5(%arg0: i32) -> (i32, i32) {
    %c0_i32 = arith.constant 0 : i32
    %c0_i32_0 = arith.constant 0 : i32
    %c0_i32_1 = arith.constant 0 : i32
    return %c0_i32, %c0_i32_0 : i32, i32
  }
  func.func @transform_6(%arg0: i32) -> (i32, i32) {
    %c0_i32 = arith.constant 0 : i32
    %c0_i32_0 = arith.constant 0 : i32
    %c0_i32_1 = arith.constant 0 : i32
    return %c0_i32, %c0_i32_0 : i32, i32
  }
  func.func @transform_7(%arg0: i32) -> (i32, i32) {
    %c0_i32 = arith.constant 0 : i32
    %c0_i32_0 = arith.constant 0 : i32
    return %arg0, %c0_i32 : i32, i32
  }
}

</mosaic_0001>

<llo_original>
// kernel: tpu_custom_call.1
$region0: #{tpu_custom_call.1}
  #allocation0 [shape = 'u32[]', space=smem, size = 0x4, offset = 0x4, fixed_abs, tag = 'smem constant byte address 0x4 - core index']
  #allocation1 [shape = 'u32[72,128]{1,0:T(1,128)}', space=vmem, size = 0x9000, scoped, tag = 'internal scratch']
  %s0 = inlined_call_operand.vmem [shape: f32[2,8], index: 0, kind: input, shape index: {}]
  %s1 = inlined_call_operand.vmem [shape: f32[2,6], index: 1, kind: input, shape index: {}]
  %s2 = inlined_call_operand.vmem [shape: f32[6,32], index: 2, kind: input, shape index: {}]
  %s3 = inlined_call_operand.vmem [shape: f32[8,64], index: 3, kind: input, shape index: {}]
  %s4 = inlined_call_operand.vmem [shape: f32[32,64], index: 4, kind: input, shape index: {}]
  %s5 = inlined_call_operand.vmem [shape: f32[64,32], index: 5, kind: input, shape index: {}]
  %s6 = inlined_call_operand.vmem [shape: f32[3,128], index: 6, kind: input, shape index: {}]
  %s7 = inlined_call_operand.hbm [shape: f32[2,32], index: 7, kind: output, shape index: {}]
  %s8 = sld [smem:[#allocation0]]
  $region38: #{tpu_custom_call.1} parent=0
    _
  %s10 = ssub.s32 1, %s8
  %s11 = scalar_select 0, %s10, %s8
  $region1: #{tpu_custom_call.1} parent=0
    #allocation2 [shape = 'u8[4096]{0}', space=vmem, size = 0x1000, scoped, tag = 'output window, operand 0, single buffered']
    #allocation3 [shape = 's32[1]{0}', space=sflag, size = 0x4, scoped, tag = 'scoped memory for tpu_custom_call.1']
    %12 = vsyncpa [#allocation3], 0
    // Predicated region
    $region2: #{tpu_custom_call.1} parent=1 // pred_check
      _
    $region3: #{tpu_custom_call.1} parent=1 // pred_check_branch
      %14 = sbr.rel (0) target = $region5
    $region4: #{tpu_custom_call.1} parent=1 // pred_region
      _
    $region5: #{tpu_custom_call.1} parent=1 // pred_fallthru
      _
    // Predicated region
    $region6: #{tpu_custom_call.1} parent=1 // pred_check
      _
    $region7: #{tpu_custom_call.1} parent=1 // pred_check_branch
      %16 = sbr.rel (0) target = $region9
    $region8: #{tpu_custom_call.1} parent=1 // pred_region
      _
    $region9: #{tpu_custom_call.1} parent=1 // pred_fallthru
      _
    // Predicated region
    $region10: #{tpu_custom_call.1} parent=1 // pred_check
      _
    $region11: #{tpu_custom_call.1} parent=1 // pred_check_branch
      %18 = sbr.rel (0) target = $region13
    $region12: #{tpu_custom_call.1} parent=1 // pred_region
      _
    $region13: #{tpu_custom_call.1} parent=1 // pred_fallthru
      _
    // Predicated region
    $region14: #{tpu_custom_call.1} parent=1 // pred_check
      _
    $region15: #{tpu_custom_call.1} parent=1 // pred_check_branch
      %20 = sbr.rel (0) target = $region17
    $region16: #{tpu_custom_call.1} parent=1 // pred_region
      _
    $region17: #{tpu_custom_call.1} parent=1 // pred_fallthru
      _
    // Predicated region
    $region18: #{tpu_custom_call.1} parent=1 // pred_check
      _
    $region19: #{tpu_custom_call.1} parent=1 // pred_check_branch
      %22 = sbr.rel (0) target = $region21
    $region20: #{tpu_custom_call.1} parent=1 // pred_region
      _
    $region21: #{tpu_custom_call.1} parent=1 // pred_fallthru
      _
    // Predicated region
    $region22: #{tpu_custom_call.1} parent=1 // pred_check
      _
    $region23: #{tpu_custom_call.1} parent=1 // pred_check_branch
      %24 = sbr.rel (0) target = $region25
    $region24: #{tpu_custom_call.1} parent=1 // pred_region
      _
    $region25: #{tpu_custom_call.1} parent=1 // pred_fallthru
      _
    // Predicated region
    $region26: #{tpu_custom_call.1} parent=1 // pred_check
      _
    $region27: #{tpu_custom_call.1} parent=1 // pred_check_branch
      %26 = sbr.rel (0) target = $region29
    $region28: #{tpu_custom_call.1} parent=1 // pred_region
      _
    $region29: #{tpu_custom_call.1} parent=1 // pred_fallthru
      _
    %v27 = vld [vmem:[%s6] sm:$0x1]
    %v28 = vld [vmem:[%s6 + $0x1] sm:$0x1]
    %v29 = vld [vmem:[%s6 + $0x2] sm:$0x1]
    %v30 = vld [vmem:[%s1] sm:$0xff]
    %v31 = vld [vmem:[%s2] sm:$0x3f]
    %v32 = vperm.slane %v27, 0
    %vm33 = vcmask 48128
    %v35 = vsel %vm33, %v30, 0
    %vm37 = vcmask 1045504
    %v39 = vsel %vm37, %v31, 0
    %41 = vmatpush.msra.mxu0 0.0
    %42 = vmatpush.msra.mxu0 0.0
    %43 = vmatpush.msra.mxu0 0.0
    %44 = vmatpush.msra.mxu0 0.0
    %45 = vmatpush.msra.mxu0 0.0
    %46 = vmatpush.msra.mxu0 0.0
    %47 = vmatpush.msra.mxu0 0.0
    %48 = vmatpush.msra.mxu0 0.0
    %49 = vmatpush.msra.mxu0 0.0
    %50 = vmatpush.msra.mxu0 0.0
    %51 = vmatpush.msra.mxu0 0.0
    %52 = vmatpush.msra.mxu0 0.0
    %53 = vmatpush.msra.mxu0 0.0
    %54 = vmatpush.msra.mxu0 0.0
    %55 = vmatpush.msra.mxu0 0.0
    %56 = vmatpush.msra.mxu0 %v39
    %57 = vmatmul.f32.gmra.mxu0 %v35
    %v58 = vpop.f32.mrf.mxu0
    %v59 = vadd.f32 %v32, %v58
    %60 = vdwg.mxu0
    %v61 = vmax.f32 %v59, 0.0
    %v62 = vld [vmem:[%s0] sm:$0xff]
    %v63 = vld [vmem:[%s3] sm:$0xff]
    %v64 = vld [vmem:[%s4] sm:$0xff]
    %v65 = vld [vmem:[%s4 + $0x8] sm:$0xff]
    %v66 = vld [vmem:[%s4 + $0x10] sm:$0xff]
    %v67 = vld [vmem:[%s4 + $0x18] sm:$0xff]
    %vm68 = vcmask 261120
    %v70 = vsel %vm68, %v61, 0
    %72 = vmatpush.msra.mxu0 0.0
    %73 = vmatpush.msra.mxu0 0.0
    %74 = vmatpush.msra.mxu0 0.0
    %75 = vmatpush.msra.mxu0 0.0
    %76 = vmatpush.msra.mxu0 0.0
    %77 = vmatpush.msra.mxu0 0.0
    %78 = vmatpush.msra.mxu0 0.0
    %79 = vmatpush.msra.mxu0 0.0
    %80 = vmatpush.msra.mxu0 0.0
    %81 = vmatpush.msra.mxu0 0.0
    %82 = vmatpush.msra.mxu0 0.0
    %83 = vmatpush.msra.mxu0 0.0
    %84 = vmatpush.msra.mxu0 %v67
    %85 = vmatpush.msra.mxu0 %v66
    %86 = vmatpush.msra.mxu0 %v65
    %87 = vmatpush.msra.mxu0 %v64
    %88 = vmatmul.f32.gmra.mxu0 %v70
    %v89 = vpop.f32.mrf.mxu0
    %v90 = vadd.f32 0.0, %v89
    %91 = vdwg.mxu0
    %vm92 = vcmask 64512
    %v94 = vsel %vm92, %v62, 0
    %96 = vmatpush.msra.mxu0 0.0
    %97 = vmatpush.msra.mxu0 0.0
    %98 = vmatpush.msra.mxu0 0.0
    %99 = vmatpush.msra.mxu0 0.0
    %100 = vmatpush.msra.mxu0 0.0
    %101 = vmatpush.msra.mxu0 0.0
    %102 = vmatpush.msra.mxu0 0.0
    %103 = vmatpush.msra.mxu0 0.0
    %104 = vmatpush.msra.mxu0 0.0
    %105 = vmatpush.msra.mxu0 0.0
    %106 = vmatpush.msra.mxu0 0.0
    %107 = vmatpush.msra.mxu0 0.0
    %108 = vmatpush.msra.mxu0 0.0
    %109 = vmatpush.msra.mxu0 0.0
    %110 = vmatpush.msra.mxu0 0.0
    %111 = vmatpush.msra.mxu0 %v63
    %112 = vmatmul.f32.gmra.mxu0 %v94
    %v113 = vpop.f32.mrf.mxu0
    %v114 = vadd.f32 %v90, %v113
    %115 = vdwg.mxu0
    %v116 = vperm.slane %v28, 0
    %v117 = vadd.f32 %v114, %v116
    %v118 = vmax.f32 %v117, 0.0
    %v119 = vld [vmem:[%s5] sm:$0xff]
    %v120 = vld [vmem:[%s5 + $0x8] sm:$0xff]
    %v121 = vld [vmem:[%s5 + $0x10] sm:$0xff]
    %v122 = vld [vmem:[%s5 + $0x18] sm:$0xff]
    %v123 = vld [vmem:[%s5 + $0x20] sm:$0xff]
    %v124 = vld [vmem:[%s5 + $0x28] sm:$0xff]
    %v125 = vld [vmem:[%s5 + $0x30] sm:$0xff]
    %v126 = vld [vmem:[%s5 + $0x38] sm:$0xff]
    %v127 = vperm.slane %v29, 0
    %vm128 = vcmask 523264
    %v130 = vsel %vm128, %v118, 0
    %132 = vmatpush.msra.mxu0 0.0
    %133 = vmatpush.msra.mxu0 0.0
    %134 = vmatpush.msra.mxu0 0.0
    %135 = vmatpush.msra.mxu0 0.0
    %136 = vmatpush.msra.mxu0 0.0
    %137 = vmatpush.msra.mxu0 0.0
    %138 = vmatpush.msra.mxu0 0.0
    %139 = vmatpush.msra.mxu0 0.0
    %140 = vmatpush.msra.mxu0 %v126
    %141 = vmatpush.msra.mxu0 %v125
    %142 = vmatpush.msra.mxu0 %v124
    %143 = vmatpush.msra.mxu0 %v123
    %144 = vmatpush.msra.mxu0 %v122
    %145 = vmatpush.msra.mxu0 %v121
    %146 = vmatpush.msra.mxu0 %v120
    %147 = vmatpush.msra.mxu0 %v119
    %148 = vmatmul.f32.gmra.mxu0 %v130
    %v149 = vpop.f32.mrf.mxu0
    %v150 = vadd.f32 %v127, %v149
    %151 = vdwg.mxu0
    %152 = vst.msk [vmem:[#allocation2] sm:$0xff] %vm68, %v150
    // Predicated region
    $region30: #{tpu_custom_call.1} parent=1 // pred_check
      _
    $region31: #{tpu_custom_call.1} parent=1 // pred_check_branch
      %154 = sbr.rel (0) target = $region33
    $region32: #{tpu_custom_call.1} parent=1 // pred_region
      %156 = vsyncadd [#allocation3], 96
      %s157 = sshll.u32 [#allocation2], 4
      %s158 = int_to_ptr.vmem [resolvable:$true] %s157
      %s159 = sshll.u32 %s7, 4
      %s160 = int_to_ptr.hbm [resolvable:$true] %s159
      %165 = dma.vmem_to_hbm [thread:$0]  %s158, 32, %s160, [#allocation3], 32, 32, 2
    $region33: #{tpu_custom_call.1} parent=1 // pred_fallthru
      _
    // Predicated region
    $region34: #{tpu_custom_call.1} parent=1 // pred_check
      _
    $region35: #{tpu_custom_call.1} parent=1 // pred_check_branch
      %167 = sbr.rel (0) target = $region37
    $region36: #{tpu_custom_call.1} parent=1 // pred_region
      %169 = dma.done [#allocation3], 128
    $region37: #{tpu_custom_call.1} parent=1 // pred_fallthru
      _
    %170 = vsyncpa [#allocation3], 1

</llo_original>
